<compile_context>
chip_gen: v7x
topology: tpu7x:2x2x1
jax: 0.10.0
libtpu: 0.0.40
codegen_flags: <defaults>
</compile_context>

<pallas_src>
import numpy as np
import jax
import jax.numpy as jnp
from jax.experimental import pallas as pl
from jax.experimental.pallas import tpu as pltpu


_LANE = 128
_BUF_BYTES = 4 * 1024 * 1024      # per-buffer tile budget (Pallas double-buffers)
_VMEM_LIMIT = 32 * 1024 * 1024    # explicit scoped-VMEM request
_LANE_DIVISOR_CAP = 8192          # max reshaped row width (lanes)


def _sublane(itemsize: int) -> int:
    # Sublane packing: 32-bit -> 8 rows, 16-bit -> 16, 8-bit -> 32.
    return max(8, 32 // max(1, itemsize))


def _round_up(x: int, m: int) -> int:
    return ((x + m - 1) // m) * m


# ----------------------------- kernels --------------------------------------


def _drop_path_kernel(mask_ref, x_ref, o_ref):
    # mask_ref: (TM, 1) (or (B, 1)) in x.dtype, already 0 or 1/keep_prob.
    o_ref[...] = x_ref[...] * mask_ref[...]


def _drop_path_residual_kernel(mask_ref, x_ref, res_ref, o_ref):
    # Fused residual add: o = residual + mask * x  (one memory pass).
    o_ref[...] = res_ref[...] + x_ref[...] * mask_ref[...]


# --------------------------- tile selection ----------------------------------


def _pick_lane_divisor(n: int, cap: int = _LANE_DIVISOR_CAP) -> int:
    """Largest C <= cap that divides n and is a multiple of 128 (0 if none)."""
    best = 0
    c = _LANE
    limit = min(n, cap)
    while c <= limit:
        if n % c == 0:
            best = c
        c += _LANE
    return best


def _pick_row_tile(r: int, c: int, itemsize: int) -> int:
    """Row tile TM for the (R, C) layout: multiple of sublane packing,
    ~<=4 MiB per block, >= ~4 grid steps when possible, prefers TM | R."""
    s = _sublane(itemsize)
    if r <= s:
        return r                                   # single full-extent row block
    tm = max(s, (_BUF_BYTES // (c * itemsize)) // s * s)
    if r >= 4 * s:                                 # keep both v7x TCs busy
        tm = min(tm, max(s, _round_up(pl.cdiv(r, 4), s)))
    elif r >= 2 * s:
        tm = min(tm, max(s, _round_up(pl.cdiv(r, 2), s)))
    tm = min(tm, _round_up(r, s))
    cand = tm                                      # prefer a divisor of r
    while cand >= s and cand * 2 > tm:
        if r % cand == 0:
            return cand
        cand -= s
    return tm


def _pick_lane_tile(n: int, b: int, itemsize: int) -> int:
    """Lane tile for the (B, N) fallback layout: multiple of 128, budgeted,
    >= ~4 grid steps when N allows, prefers TN | N."""
    tn = max(_LANE, (_BUF_BYTES // max(1, b * itemsize)) // _LANE * _LANE)
    if n >= 4 * _LANE:
        tn = min(tn, max(_LANE, _round_up(pl.cdiv(n, 4), _LANE)))
    elif n >= 2 * _LANE:
        tn = min(tn, max(_LANE, _round_up(pl.cdiv(n, 2), _LANE)))
    tn = min(tn, _round_up(n, _LANE))
    cand = tn
    while cand >= _LANE and cand * 2 > tn:
        if n % cand == 0:
            return cand
        cand -= _LANE
    return tn


# ------------------------------ wrapper ---------------------------------------


def drop_path_pallas(x, *, drop_prob=0.0, training=False, scale_by_keep=True,
                     key=None, seed=0, residual=None):
    """Pallas equivalent of mlfab drop_path(x, drop_prob, training, scale_by_keep).

    If `residual` is given, returns residual + drop_path(x) fused in one pass.
    """
    if drop_prob == 0.0 or not training:
        return x if residual is None else residual + x
    keep_prob = 1.0 - drop_prob

    b = x.shape[0]
    n = int(np.prod(x.shape[1:]))
    itemsize = jnp.dtype(x.dtype).itemsize

    # Per-sample Bernoulli mask, pre-scaled and pre-cast to x.dtype (matches
    # PyTorch's in-dtype bernoulli_/div_ behaviour).
    if key is None:
        key = jax.random.PRNGKey(seed)
    keep = jax.random.bernoulli(key, p=keep_prob, shape=(b,)).astype(jnp.float32)
    if scale_by_keep and keep_prob > 0.0:
        keep = keep / jnp.float32(keep_prob)
    keep = keep.astype(x.dtype)

    x2 = x.reshape(b, n)
    res2 = None if residual is None else residual.reshape(b, n)

    c = _pick_lane_divisor(n)
    if c:
        # Preferred (R, C) layout: full sublane occupancy, contiguous DMA blocks.
        s = n // c
        r = b * s
        tm = _pick_row_tile(r, c, itemsize)
        grid = (pl.cdiv(r, tm),)
        data_spec = pl.BlockSpec((tm, c), lambda i: (i, 0))
        mask_spec = pl.BlockSpec((tm, 1), lambda i: (i, 0))
        out_shape = jax.ShapeDtypeStruct((r, c), x.dtype)
        mask = jnp.repeat(keep, s).reshape(r, 1)
        operands = [mask, x2.reshape(r, c)]
        if res2 is not None:
            operands.append(res2.reshape(r, c))
    else:
        # N has no multiple-of-128 divisor: keep (B, N); ragged final lane block
        # is masked by Pallas (pipelining preserved, never one giant block).
        tn = _pick_lane_tile(n, b, itemsize)
        grid = (pl.cdiv(n, tn),)
        data_spec = pl.BlockSpec((b, tn), lambda j: (0, j))
        mask_spec = pl.BlockSpec((b, 1), lambda j: (0, 0))
        out_shape = jax.ShapeDtypeStruct((b, n), x.dtype)
        operands = [keep.reshape(b, 1), x2]
        if res2 is not None:
            operands.append(res2)

    n_data = 1 if res2 is None else 2
    kernel = _drop_path_kernel if res2 is None else _drop_path_residual_kernel

    out = pl.pallas_call(
        kernel,
        out_shape=out_shape,
        grid=grid,
        in_specs=[mask_spec] + [data_spec] * n_data,
        out_specs=data_spec,
        compiler_params=pltpu.CompilerParams(
            dimension_semantics=("parallel",),
            vmem_limit_bytes=_VMEM_LIMIT,
        ),
        cost_estimate=pl.CostEstimate(
            flops=(1 + (n_data - 1)) * b * n,
            transcendentals=0,
            bytes_accessed=(1 + n_data) * b * n * itemsize + b * itemsize,
        ),
    )(*operands)

    return out.reshape(x.shape)


class DropPath:
    """JAX/Pallas mirror of the PyTorch DropPath module."""

    def __init__(self, drop_prob: float = 0.0, scale_by_keep: bool = True) -> None:
        self.drop_prob = drop_prob
        self.scale_by_keep = scale_by_keep
        self.training = True

    def __call__(self, x, *, key=None, seed=0, residual=None):
        return drop_path_pallas(
            x,
            drop_prob=self.drop_prob,
            training=self.training,
            scale_by_keep=self.scale_by_keep,
            key=key,
            seed=seed,
            residual=residual,
        )


if __name__ == "__main__":
    root = jax.random.PRNGKey(0)
    kx, kmask, kres, kmask2 = jax.random.split(root, 4)

    # NCHW input, same convention as the PyTorch module.
    x = jax.random.normal(kx, (2, 4, 16, 16), dtype=jnp.float32)

    mod = DropPath(drop_prob=0.5, scale_by_keep=True)
    mod.training = True
    y = jax.block_until_ready(mod(x, key=kmask))
    assert y.shape == x.shape and y.dtype == x.dtype

    # Per-sample, the output must equal either 0 or x / keep_prob (mask is
    # per-sample, broadcast over all other dims).
    keep_prob = 1.0 - mod.drop_prob
    x_np, y_np = np.asarray(x), np.asarray(y)
    for bi in range(x_np.shape[0]):
        dropped = np.allclose(y_np[bi], 0.0)
        kept = np.allclose(y_np[bi], x_np[bi] / keep_prob, rtol=1e-6, atol=1e-6)
        assert dropped or kept, "per-sample mask semantics violated"

    # Fused residual path: o = residual + drop_path(x) with the same key must
    # equal residual + (plain drop_path output).
    res = jax.random.normal(kres, x.shape, dtype=jnp.float32)
    y_fused = jax.block_until_ready(mod(x, key=kmask, residual=res))
    assert np.allclose(np.asarray(y_fused), np.asarray(res) + y_np, rtol=1e-6, atol=1e-6)

    # Irregular N (no multiple-of-128 divisor) exercises the lane-tiled fallback.
    x_irr = jax.random.normal(kx, (2, 3, 5, 7), dtype=jnp.float32)
    mod_irr = DropPath(drop_prob=0.3, scale_by_keep=True)
    mod_irr.training = True
    y_irr = jax.block_until_ready(mod_irr(x_irr, key=kmask2))
    kp_irr = 1.0 - mod_irr.drop_prob
    xi_np, yi_np = np.asarray(x_irr), np.asarray(y_irr)
    for bi in range(xi_np.shape[0]):
        dropped = np.allclose(yi_np[bi], 0.0)
        kept = np.allclose(yi_np[bi], xi_np[bi] / kp_irr, rtol=1e-6, atol=1e-6)
        assert dropped or kept, "irregular-N per-sample mask semantics violated"

    # Eval mode (or drop_prob == 0) is the identity.
    mod.training = False
    y_eval = jax.block_until_ready(mod(x, key=kmask))
    assert np.allclose(np.asarray(y_eval), x_np)

    print("KERNEL_OK")
</pallas_src>

<mosaic_0001>
module attributes {stable_mosaic.version = 11 : i64} {
  func.func @_drop_path_kernel(%arg0: i32, %arg1: memref<2x1xf32, #tpu.memory_space<vmem>>, %arg2: memref<2x1024xf32, #tpu.memory_space<vmem>>, %arg3: memref<2x1024xf32, #tpu.memory_space<vmem>>) attributes {dimension_semantics = [#tpu.dimension_semantics<parallel>], iteration_bounds = array<i64: 1>, scalar_prefetch = 0 : i64, scratch_operands = 0 : i64, tpu.core_type = #tpu.core_type<tc>, window_params = [{transform_indices = @transform_0, window_bounds = array<i64: 2, 1>}, {transform_indices = @transform_1, window_bounds = array<i64: 2, 1024>}, {transform_indices = @transform_2, window_bounds = array<i64: 2, 1024>}]} {
    %c0 = arith.constant 0 : index
    %c0_0 = arith.constant 0 : index
    %0 = vector.load %arg2[%c0, %c0_0] : memref<2x1024xf32, #tpu.memory_space<vmem>>, vector<2x1024xf32>
    %c0_1 = arith.constant 0 : index
    %c0_2 = arith.constant 0 : index
    %1 = vector.load %arg1[%c0_1, %c0_2] : memref<2x1xf32, #tpu.memory_space<vmem>>, vector<2x1xf32>
    %2 = vector.broadcast %1 : vector<2x1xf32> to vector<2x1024xf32>
    %3 = arith.mulf %0, %2 : vector<2x1024xf32>
    %c0_3 = arith.constant 0 : index
    %c0_4 = arith.constant 0 : index
    %4 = vector.load %arg3[%c0_3, %c0_4] : memref<2x1024xf32, #tpu.memory_space<vmem>>, vector<2x1024xf32>
    tpu.vector_store %arg3[%c0_3, %c0_4], %3 {strides = array<i32>} : memref<2x1024xf32, #tpu.memory_space<vmem>>, vector<2x1024xf32>,
    return
  }
  func.func @transform_0(%arg0: i32) -> (i32, i32) {
    %c0_i32 = arith.constant 0 : i32
    %c0_i32_0 = arith.constant 0 : i32
    return %arg0, %c0_i32 : i32, i32
  }
  func.func @transform_1(%arg0: i32) -> (i32, i32) {
    %c0_i32 = arith.constant 0 : i32
    %c0_i32_0 = arith.constant 0 : i32
    return %arg0, %c0_i32 : i32, i32
  }
  func.func @transform_2(%arg0: i32) -> (i32, i32) {
    %c0_i32 = arith.constant 0 : i32
    %c0_i32_0 = arith.constant 0 : i32
    return %arg0, %c0_i32 : i32, i32
  }
}

</mosaic_0001>

<llo_original>
// kernel: tpu_custom_call.1
$region0: #{tpu_custom_call.1}
  #allocation0 [shape = 'u32[]', space=smem, size = 0x4, offset = 0x4, fixed_abs, tag = 'smem constant byte address 0x4 - core index']
  #allocation1 [shape = 'u32[144,128]{1,0:T(1,128)}', space=vmem, size = 0x12000, scoped, tag = 'internal scratch']
  %s0 = inlined_call_operand.vmem [shape: f32[2,1], index: 0, kind: input, shape index: {}]
  %s1 = inlined_call_operand.hbm [shape: f32[2,1024], index: 1, kind: input, shape index: {}]
  %s2 = inlined_call_operand.hbm [shape: f32[2,1024], index: 2, kind: output, shape index: {}]
  %s3 = sld [smem:[#allocation0]]
  $region22: #{tpu_custom_call.1} parent=0
    _
  %s5 = ssub.s32 1, %s3
  %s6 = scalar_select 0, %s5, %s3
  $region1: #{tpu_custom_call.1} parent=0
    #allocation2 [shape = 'u8[8192]{0}', space=vmem, size = 0x2000, scoped, tag = 'input window, operand 1, single buffered']
    #allocation3 [shape = 's32[1]{0}', space=sflag, size = 0x4, scoped, tag = 'scoped memory for tpu_custom_call.1']
    #allocation4 [shape = 's32[1]{0}', space=sflag, size = 0x4, scoped, tag = 'scoped memory for tpu_custom_call.1']
    #allocation5 [shape = 'u8[8192]{0}', space=vmem, size = 0x2000, scoped, tag = 'output window, operand 0, single buffered']
    %7 = vsyncpa [#allocation3], 0
    %8 = vsyncpa [#allocation4], 0
    // Predicated region
    $region2: #{tpu_custom_call.1} parent=1 // pred_check
      _
    $region3: #{tpu_custom_call.1} parent=1 // pred_check_branch
      %10 = sbr.rel (0) target = $region5
    $region4: #{tpu_custom_call.1} parent=1 // pred_region
      _
    $region5: #{tpu_custom_call.1} parent=1 // pred_fallthru
      _
    // Predicated region
    $region6: #{tpu_custom_call.1} parent=1 // pred_check
      _
    $region7: #{tpu_custom_call.1} parent=1 // pred_check_branch
      %12 = sbr.rel (0) target = $region9
    $region8: #{tpu_custom_call.1} parent=1 // pred_region
      %s14 = ssub.s32 256, 256
      %15 = vsyncadd [#allocation3], %s14
      %s17 = sshll.u32 [#allocation2], 4
      %s18 = int_to_ptr.vmem [resolvable:$true] %s17
      %20 = dma.hbm_to_vmem [thread:$0]  %s1, 256, %s18, [#allocation3]
    $region9: #{tpu_custom_call.1} parent=1 // pred_fallthru
      _
    // Predicated region
    $region10: #{tpu_custom_call.1} parent=1 // pred_check
      _
    $region11: #{tpu_custom_call.1} parent=1 // pred_check_branch
      %22 = sbr.rel (0) target = $region13
    $region12: #{tpu_custom_call.1} parent=1 // pred_region
      %23 = dma.done [#allocation3], 256
    $region13: #{tpu_custom_call.1} parent=1 // pred_fallthru
      _
    %v24 = vld [vmem:[#allocation2] sm:$0xff]
    %v25 = vld [vmem:[#allocation2 + $0x8] sm:$0xff]
    %v26 = vld [vmem:[%s0] sm:$0x3]
    %28 = vset.pattern.permute.xlu0 0
    %29 = vperm.xlu0 %28, %v26
    %v30 = vpop.permute.xlu0 %29
    %v32 = vunpack.c.l.s4 269488144
    %v33 = vunpack.c.0.s8 %v32
    %v34 = vlaneseq
    %v35 = vshrl.u32 %v34, 7
    %v36 = vsub.s32 %v33, %v35
    %v37 = vrot.slane %v30, %v36
    %v39 = vmul.f32 %v24, %v37
    %v40 = vmul.f32 %v25, %v37
    %41 = vst [vmem:[#allocation5] sm:$0xff] %v39
    %42 = vst [vmem:[#allocation5 + $0x8] sm:$0xff] %v40
    // Predicated region
    $region14: #{tpu_custom_call.1} parent=1 // pred_check
      _
    $region15: #{tpu_custom_call.1} parent=1 // pred_check_branch
      %44 = sbr.rel (0) target = $region17
    $region16: #{tpu_custom_call.1} parent=1 // pred_region
      %s46 = ssub.s32 256, 256
      %47 = vsyncadd [#allocation4], %s46
      %s49 = sshll.u32 [#allocation5], 4
      %s50 = int_to_ptr.vmem [resolvable:$true] %s49
      %52 = dma.vmem_to_hbm [thread:$0]  %s50, 256, %s2, [#allocation4]
    $region17: #{tpu_custom_call.1} parent=1 // pred_fallthru
      _
    // Predicated region
    $region18: #{tpu_custom_call.1} parent=1 // pred_check
      _
    $region19: #{tpu_custom_call.1} parent=1 // pred_check_branch
      %54 = sbr.rel (0) target = $region21
    $region20: #{tpu_custom_call.1} parent=1 // pred_region
      %55 = dma.done [#allocation4], 256
    $region21: #{tpu_custom_call.1} parent=1 // pred_fallthru
      _
    %56 = vsyncpa [#allocation3], 1
    %57 = vsyncpa [#allocation4], 1

</llo_original>
